<compile_context>
chip_gen: v7x
topology: tpu7x:2x2x1
jax: 0.10.0
libtpu: 0.0.40
codegen_flags: <defaults>
</compile_context>

<pallas_src>
import functools

import jax
import jax.numpy as jnp
from jax import lax
from jax.experimental import pallas as pl
from jax.experimental.pallas import tpu as pltpu

_LN_EPS = 1e-5  # nn.LayerNorm default


def sgu_kernel(x_ref, w_ref, gamma_ref, beta_ref, bias_ref, o_ref):
    # x_ref     : (BB, S, 2D) f32  -- one contiguous window of x per grid step
    # w_ref     : (S, S)      f32  -- spatial-projection weight (resident across grid)
    # gamma_ref : (1, D)      f32  -- LayerNorm scale
    # beta_ref  : (1, D)      f32  -- LayerNorm shift
    # bias_ref  : (S, 1)      f32  -- Conv1d bias (per output "channel" == seq pos)
    # o_ref     : (BB, S, D)
    bb, _, d = o_ref.shape

    # Hoisted small loads (shared across the per-batch loop).
    w = w_ref[...]            # (S, S)
    gamma = gamma_ref[...]    # (1, D) -> broadcasts over rows
    beta = beta_ref[...]      # (1, D)
    bias = bias_ref[...]      # (S, 1) -> broadcasts over lanes

    inv_d = 1.0 / d

    # Static unrolled loop over the batch rows of this block (bb <= 4).
    for b in range(bb):
        # v half first (the u half is only needed for the final gate).
        # D is a multiple of 128 here, so these slices sit on lane-tile
        # boundaries -> no relayout.  (For D % 128 != 0 this stays correct but
        # may insert an in-VMEM copy.)
        v = x_ref[b, :, pl.ds(d, d)]                      # (S, D) f32

        # Two-pass LayerNorm (matches PyTorch numerics), all in f32.
        mean = jnp.sum(v, axis=-1, keepdims=True) * inv_d
        vc = v - mean
        var = jnp.sum(vc * vc, axis=-1, keepdims=True) * inv_d
        vn = vc * lax.rsqrt(var + _LN_EPS) * gamma + beta  # (S, D)

        # Spatial projection: Conv1d(seq_len, seq_len, kernel_size=1) over
        # channels == seq is exactly an (S, S) matmul on the sequence axis.
        vp = jnp.dot(w, vn, preferred_element_type=jnp.float32) + bias  # (S, D)

        u = x_ref[b, :, pl.ds(0, d)]                      # (S, D) f32
        o_ref[b] = (u * vp).astype(o_ref.dtype)


@functools.partial(jax.jit, static_argnames=("block_batch",))
def spatial_gating_unit(x, w, bias, gamma, beta, *, block_batch=2):
    """x: (B, S, 2*D) f32; w: (S, S); bias: (S,); gamma, beta: (D,).

    block_batch: batch rows per grid step.  2 keeps >=2 parallel steps for the
    two v7x TensorCores at B=8; 4 is preferred on single-TC v5e/v6e.
    """
    B, S, twoD = x.shape
    D = twoD // 2

    bb = block_batch if (B % block_batch == 0) else 1
    grid = (B // bb,)

    w_f32 = w.astype(jnp.float32)
    gamma_2d = gamma.reshape(1, D).astype(jnp.float32)
    beta_2d = beta.reshape(1, D).astype(jnp.float32)
    bias_2d = bias.reshape(S, 1).astype(jnp.float32)

    flops = 2 * B * S * S * D + 8 * B * S * D
    bytes_accessed = (B * S * twoD * 4        # x
                      + B * S * D * 4         # out
                      + S * S * 4             # W
                      + 2 * D * 4 + S * 4)    # gamma, beta, bias
    cost = pl.CostEstimate(flops=flops, transcendentals=B * S,
                           bytes_accessed=bytes_accessed)

    return pl.pallas_call(
        sgu_kernel,
        out_shape=jax.ShapeDtypeStruct((B, S, D), x.dtype),
        grid_spec=pltpu.PrefetchScalarGridSpec(
            num_scalar_prefetch=0,
            grid=grid,
            in_specs=[
                pl.BlockSpec((bb, S, twoD), lambda i: (i, 0, 0)),  # x (contiguous)
                pl.BlockSpec((S, S), lambda i: (0, 0)),            # W (resident)
                pl.BlockSpec((1, D), lambda i: (0, 0)),            # LN gamma
                pl.BlockSpec((1, D), lambda i: (0, 0)),            # LN beta
                pl.BlockSpec((S, 1), lambda i: (0, 0)),            # conv bias
            ],
            out_specs=pl.BlockSpec((bb, S, D), lambda i: (i, 0, 0)),
        ),
        compiler_params=pltpu.CompilerParams(
            dimension_semantics=("parallel",),
        ),
        cost_estimate=cost,
    )(x, w_f32, gamma_2d, beta_2d, bias_2d)


def reference_f32(x, w, bias, gamma, beta):
    """Pure-f32 PyTorch-equivalent reference."""
    D = x.shape[-1] // 2
    u, v = x[..., :D], x[..., D:]
    mean = jnp.mean(v, axis=-1, keepdims=True)
    var = jnp.mean((v - mean) ** 2, axis=-1, keepdims=True)
    vn = (v - mean) * lax.rsqrt(var + _LN_EPS)
    vn = vn * gamma.reshape(1, 1, D) + beta.reshape(1, 1, D)
    vp = jnp.einsum("ij,bjd->bid", w, vn,
                    precision=lax.Precision.HIGHEST) + bias.reshape(1, -1, 1)
    return u * vp


if __name__ == "__main__":
    # d_ffn = seq_len = 128 keeps every store lane-dense (full 128-lane tiles);
    # B = 8 gives 4 "parallel" grid steps at block_batch=2. Total input ~1 MB.
    B, S, D = 8, 128, 128
    key = jax.random.PRNGKey(0)
    kx, kw, kg, kb = jax.random.split(key, 4)

    x = jax.random.normal(kx, (B, S, 2 * D), dtype=jnp.float32)

    # Deterministic synthetic parameters:
    #  - Conv1d(seq_len, seq_len, 1) weight ~ U(-1/sqrt(S), 1/sqrt(S)); bias = 1.0
    #    (matching nn.init.constant_(bias, 1.0) in the module).
    #  - LayerNorm affine perturbed from defaults to exercise gamma/beta paths.
    bound = 1.0 / (S ** 0.5)
    w = jax.random.uniform(kw, (S, S), dtype=jnp.float32, minval=-bound, maxval=bound)
    bias = jnp.ones((S,), dtype=jnp.float32)
    gamma = 1.0 + 0.1 * jax.random.normal(kg, (D,), dtype=jnp.float32)
    beta = 0.1 * jax.random.normal(kb, (D,), dtype=jnp.float32)

    out = jax.block_until_ready(spatial_gating_unit(x, w, bias, gamma, beta))
    assert out.shape == (B, S, D)

    ref = reference_f32(x, w, bias, gamma, beta)
    max_diff = float(jnp.max(jnp.abs(out - ref)))
    # f32 math end-to-end; tolerance leaves headroom for MXU f32 pass rounding.
    assert jnp.allclose(out, ref, atol=1e-2, rtol=1e-2), \
        f"max |diff| vs f32 reference = {max_diff}"

    print("KERNEL_OK")
</pallas_src>

<mosaic_0001>
module attributes {stable_mosaic.version = 11 : i64} {
  func.func @sgu_kernel(%arg0: i32, %arg1: memref<2x128x256xf32, #tpu.memory_space<vmem>>, %arg2: memref<128x128xf32, #tpu.memory_space<vmem>>, %arg3: memref<1x128xf32, #tpu.memory_space<vmem>>, %arg4: memref<1x128xf32, #tpu.memory_space<vmem>>, %arg5: memref<128x1xf32, #tpu.memory_space<vmem>>, %arg6: memref<2x128x128xf32, #tpu.memory_space<vmem>>) attributes {dimension_semantics = [#tpu.dimension_semantics<parallel>], iteration_bounds = array<i64: 4>, scalar_prefetch = 0 : i64, scratch_operands = 0 : i64, tpu.core_type = #tpu.core_type<tc>, window_params = [{transform_indices = @transform_0, window_bounds = array<i64: 2, 128, 256>}, {pipeline_mode = #tpu.pipeline_mode<synchronous>, transform_indices = @transform_1, window_bounds = array<i64: 128, 128>}, {pipeline_mode = #tpu.pipeline_mode<synchronous>, transform_indices = @transform_2, window_bounds = array<i64: 1, 128>}, {pipeline_mode = #tpu.pipeline_mode<synchronous>, transform_indices = @transform_3, window_bounds = array<i64: 1, 128>}, {pipeline_mode = #tpu.pipeline_mode<synchronous>, transform_indices = @transform_4, window_bounds = array<i64: 128, 1>}, {transform_indices = @transform_5, window_bounds = array<i64: 2, 128, 128>}]} {
    %c0 = arith.constant 0 : index
    %c0_0 = arith.constant 0 : index
    %0 = vector.load %arg2[%c0, %c0_0] : memref<128x128xf32, #tpu.memory_space<vmem>>, vector<128x128xf32>
    %c0_1 = arith.constant 0 : index
    %c0_2 = arith.constant 0 : index
    %1 = vector.load %arg3[%c0_1, %c0_2] : memref<1x128xf32, #tpu.memory_space<vmem>>, vector<1x128xf32>
    %c0_3 = arith.constant 0 : index
    %c0_4 = arith.constant 0 : index
    %2 = vector.load %arg4[%c0_3, %c0_4] : memref<1x128xf32, #tpu.memory_space<vmem>>, vector<1x128xf32>
    %c0_5 = arith.constant 0 : index
    %c0_6 = arith.constant 0 : index
    %3 = vector.load %arg5[%c0_5, %c0_6] : memref<128x1xf32, #tpu.memory_space<vmem>>, vector<128x1xf32>
    %c0_7 = arith.constant 0 : index
    %c0_8 = arith.constant 0 : index
    %c128 = arith.constant 128 : index
    %4 = vector.load %arg1[%c0_7, %c0_8, %c128] : memref<2x128x256xf32, #tpu.memory_space<vmem>>, vector<1x128x128xf32>
    %5 = vector.shape_cast %4 : vector<1x128x128xf32> to vector<128x128xf32>
    %cst = arith.constant dense<0.000000e+00> : vector<128xf32>
    %6 = vector.multi_reduction <add>, %5, %cst [1] : vector<128x128xf32> to vector<128xf32>
    %7 = vector.shape_cast %6 : vector<128xf32> to vector<128x1xf32>
    %cst_9 = arith.constant 7.812500e-03 : f32
    %8 = vector.broadcast %cst_9 : f32 to vector<128x1xf32>
    %9 = arith.mulf %7, %8 : vector<128x1xf32>
    %10 = vector.broadcast %9 : vector<128x1xf32> to vector<128x128xf32>
    %11 = arith.subf %5, %10 : vector<128x128xf32>
    %12 = arith.mulf %11, %11 : vector<128x128xf32>
    %cst_10 = arith.constant dense<0.000000e+00> : vector<128xf32>
    %13 = vector.multi_reduction <add>, %12, %cst_10 [1] : vector<128x128xf32> to vector<128xf32>
    %14 = vector.shape_cast %13 : vector<128xf32> to vector<128x1xf32>
    %cst_11 = arith.constant 7.812500e-03 : f32
    %15 = vector.broadcast %cst_11 : f32 to vector<128x1xf32>
    %16 = arith.mulf %14, %15 : vector<128x1xf32>
    %cst_12 = arith.constant 9.99999974E-6 : f32
    %17 = vector.broadcast %cst_12 : f32 to vector<128x1xf32>
    %18 = arith.addf %16, %17 : vector<128x1xf32>
    %19 = math.rsqrt %18 : vector<128x1xf32>
    %20 = vector.broadcast %19 : vector<128x1xf32> to vector<128x128xf32>
    %21 = arith.mulf %11, %20 : vector<128x128xf32>
    %22 = vector.broadcast %1 : vector<1x128xf32> to vector<128x128xf32>
    %23 = arith.mulf %21, %22 : vector<128x128xf32>
    %24 = vector.broadcast %2 : vector<1x128xf32> to vector<128x128xf32>
    %25 = arith.addf %23, %24 : vector<128x128xf32>
    %cst_13 = arith.constant dense<0.000000e+00> : vector<128x128xf32>
    %26 = tpu.matmul %0, %25, %cst_13 {dimension_numbers = #tpu.dot_dimension_numbers<[1], [0], [0], [1], [0, 0, 1, 1], [], []>} : vector<128x128xf32>, vector<128x128xf32>, vector<128x128xf32> -> vector<128x128xf32>
    %27 = vector.broadcast %3 : vector<128x1xf32> to vector<128x128xf32>
    %28 = arith.addf %26, %27 : vector<128x128xf32>
    %c0_14 = arith.constant 0 : index
    %c0_15 = arith.constant 0 : index
    %c0_16 = arith.constant 0 : index
    %29 = vector.load %arg1[%c0_14, %c0_15, %c0_16] : memref<2x128x256xf32, #tpu.memory_space<vmem>>, vector<1x128x128xf32>
    %30 = vector.shape_cast %29 : vector<1x128x128xf32> to vector<128x128xf32>
    %31 = arith.mulf %30, %28 : vector<128x128xf32>
    %c0_17 = arith.constant 0 : index
    %c0_18 = arith.constant 0 : index
    %c0_19 = arith.constant 0 : index
    %32 = vector.load %arg6[%c0_17, %c0_18, %c0_19] : memref<2x128x128xf32, #tpu.memory_space<vmem>>, vector<1x128x128xf32>
    %33 = vector.shape_cast %32 : vector<1x128x128xf32> to vector<128x128xf32>
    %34 = vector.shape_cast %31 : vector<128x128xf32> to vector<1x128x128xf32>
    tpu.vector_store %arg6[%c0_17, %c0_18, %c0_19], %34 {strides = array<i32>} : memref<2x128x128xf32, #tpu.memory_space<vmem>>, vector<1x128x128xf32>,
    %c1 = arith.constant 1 : index
    %c0_20 = arith.constant 0 : index
    %c128_21 = arith.constant 128 : index
    %35 = vector.load %arg1[%c1, %c0_20, %c128_21] : memref<2x128x256xf32, #tpu.memory_space<vmem>>, vector<1x128x128xf32>
    %36 = vector.shape_cast %35 : vector<1x128x128xf32> to vector<128x128xf32>
    %cst_22 = arith.constant dense<0.000000e+00> : vector<128xf32>
    %37 = vector.multi_reduction <add>, %36, %cst_22 [1] : vector<128x128xf32> to vector<128xf32>
    %38 = vector.shape_cast %37 : vector<128xf32> to vector<128x1xf32>
    %cst_23 = arith.constant 7.812500e-03 : f32
    %39 = vector.broadcast %cst_23 : f32 to vector<128x1xf32>
    %40 = arith.mulf %38, %39 : vector<128x1xf32>
    %41 = vector.broadcast %40 : vector<128x1xf32> to vector<128x128xf32>
    %42 = arith.subf %36, %41 : vector<128x128xf32>
    %43 = arith.mulf %42, %42 : vector<128x128xf32>
    %cst_24 = arith.constant dense<0.000000e+00> : vector<128xf32>
    %44 = vector.multi_reduction <add>, %43, %cst_24 [1] : vector<128x128xf32> to vector<128xf32>
    %45 = vector.shape_cast %44 : vector<128xf32> to vector<128x1xf32>
    %cst_25 = arith.constant 7.812500e-03 : f32
    %46 = vector.broadcast %cst_25 : f32 to vector<128x1xf32>
    %47 = arith.mulf %45, %46 : vector<128x1xf32>
    %cst_26 = arith.constant 9.99999974E-6 : f32
    %48 = vector.broadcast %cst_26 : f32 to vector<128x1xf32>
    %49 = arith.addf %47, %48 : vector<128x1xf32>
    %50 = math.rsqrt %49 : vector<128x1xf32>
    %51 = vector.broadcast %50 : vector<128x1xf32> to vector<128x128xf32>
    %52 = arith.mulf %42, %51 : vector<128x128xf32>
    %53 = vector.broadcast %1 : vector<1x128xf32> to vector<128x128xf32>
    %54 = arith.mulf %52, %53 : vector<128x128xf32>
    %55 = vector.broadcast %2 : vector<1x128xf32> to vector<128x128xf32>
    %56 = arith.addf %54, %55 : vector<128x128xf32>
    %cst_27 = arith.constant dense<0.000000e+00> : vector<128x128xf32>
    %57 = tpu.matmul %0, %56, %cst_27 {dimension_numbers = #tpu.dot_dimension_numbers<[1], [0], [0], [1], [0, 0, 1, 1], [], []>} : vector<128x128xf32>, vector<128x128xf32>, vector<128x128xf32> -> vector<128x128xf32>
    %58 = vector.broadcast %3 : vector<128x1xf32> to vector<128x128xf32>
    %59 = arith.addf %57, %58 : vector<128x128xf32>
    %c1_28 = arith.constant 1 : index
    %c0_29 = arith.constant 0 : index
    %c0_30 = arith.constant 0 : index
    %60 = vector.load %arg1[%c1_28, %c0_29, %c0_30] : memref<2x128x256xf32, #tpu.memory_space<vmem>>, vector<1x128x128xf32>
    %61 = vector.shape_cast %60 : vector<1x128x128xf32> to vector<128x128xf32>
    %62 = arith.mulf %61, %59 : vector<128x128xf32>
    %c1_31 = arith.constant 1 : index
    %c0_32 = arith.constant 0 : index
    %c0_33 = arith.constant 0 : index
    %63 = vector.load %arg6[%c1_31, %c0_32, %c0_33] : memref<2x128x128xf32, #tpu.memory_space<vmem>>, vector<1x128x128xf32>
    %64 = vector.shape_cast %63 : vector<1x128x128xf32> to vector<128x128xf32>
    %65 = vector.shape_cast %62 : vector<128x128xf32> to vector<1x128x128xf32>
    tpu.vector_store %arg6[%c1_31, %c0_32, %c0_33], %65 {strides = array<i32>} : memref<2x128x128xf32, #tpu.memory_space<vmem>>, vector<1x128x128xf32>,
    return
  }
  func.func @transform_0(%arg0: i32) -> (i32, i32, i32) {
    %c0_i32 = arith.constant 0 : i32
    %c0_i32_0 = arith.constant 0 : i32
    %c0_i32_1 = arith.constant 0 : i32
    return %arg0, %c0_i32, %c0_i32_0 : i32, i32, i32
  }
  func.func @transform_1(%arg0: i32) -> (i32, i32) {
    %c0_i32 = arith.constant 0 : i32
    %c0_i32_0 = arith.constant 0 : i32
    %c0_i32_1 = arith.constant 0 : i32
    return %c0_i32, %c0_i32_0 : i32, i32
  }
  func.func @transform_2(%arg0: i32) -> (i32, i32) {
    %c0_i32 = arith.constant 0 : i32
    %c0_i32_0 = arith.constant 0 : i32
    %c0_i32_1 = arith.constant 0 : i32
    return %c0_i32, %c0_i32_0 : i32, i32
  }
  func.func @transform_3(%arg0: i32) -> (i32, i32) {
    %c0_i32 = arith.constant 0 : i32
    %c0_i32_0 = arith.constant 0 : i32
    %c0_i32_1 = arith.constant 0 : i32
    return %c0_i32, %c0_i32_0 : i32, i32
  }
  func.func @transform_4(%arg0: i32) -> (i32, i32) {
    %c0_i32 = arith.constant 0 : i32
    %c0_i32_0 = arith.constant 0 : i32
    %c0_i32_1 = arith.constant 0 : i32
    return %c0_i32, %c0_i32_0 : i32, i32
  }
  func.func @transform_5(%arg0: i32) -> (i32, i32, i32) {
    %c0_i32 = arith.constant 0 : i32
    %c0_i32_0 = arith.constant 0 : i32
    %c0_i32_1 = arith.constant 0 : i32
    return %arg0, %c0_i32, %c0_i32_0 : i32, i32, i32
  }
}

</mosaic_0001>

<llo_original>
// kernel: spatial_gating_unit.1
$region0: #{spatial_gating_unit.1}
  #allocation0 [shape = 'u32[]', space=smem, size = 0x4, offset = 0x4, fixed_abs, tag = 'smem constant byte address 0x4 - core index']
  #allocation1 [shape = 'u32[144,128]{1,0:T(1,128)}', space=vmem, size = 0x12000, scoped, tag = 'internal scratch']
  %s0 = inlined_call_operand.hbm [shape: f32[8,128,256], index: 0, kind: input, shape index: {}]
  %s1 = inlined_call_operand.vmem [shape: f32[128,128], index: 1, kind: input, shape index: {}]
  %s2 = inlined_call_operand.vmem [shape: f32[1,128], index: 2, kind: input, shape index: {}]
  %s3 = inlined_call_operand.vmem [shape: f32[1,128], index: 3, kind: input, shape index: {}]
  %s4 = inlined_call_operand.vmem [shape: f32[128,1], index: 4, kind: input, shape index: {}]
  %s5 = inlined_call_operand.hbm [shape: f32[8,128,128], index: 5, kind: output, shape index: {}]
  %s6 = sld [smem:[#allocation0]]
  $region57: #{spatial_gating_unit.1} parent=0
    _
  %s8 = ssub.s32 1, %s6
  %s9 = scalar_select 0, %s8, %s6
  $region1: #{spatial_gating_unit.1} parent=0
    #allocation2 [shape = 'u8[524288]{0}', space=vmem, size = 0x80000, scoped, tag = 'input window, operand 0']
    #allocation3 [shape = 's32[2]{0}', space=sflag, size = 0x8, scoped, tag = 'scoped memory for spatial_gating_unit.1']
    #allocation4 [shape = 's32[2]{0}', space=sflag, size = 0x8, scoped, tag = 'scoped memory for spatial_gating_unit.1']
    #allocation5 [shape = 'u8[262144]{0}', space=vmem, size = 0x40000, scoped, tag = 'output window, operand 0']
    %10 = vsyncpa [#allocation3], 0
    %s11 = scalar_lea.sflag [#allocation3], 1
    %12 = vsyncpa %s11, 0
    %13 = vsyncpa [#allocation4], 0
    %s14 = scalar_lea.sflag [#allocation4], 1
    %15 = vsyncpa %s14, 0
    loop: start=0, step=1, limit=6
    $region2: #{spatial_gating_unit.1} parent=1 // loop_pre_header
      _
    $region3: #{spatial_gating_unit.1} parent=1 // loop_header
      %s17 = sphi 0, %s21
      %p18 = scmp.ge.s32.totalorder %s17, 6
      %s27 = sphi 0, %s29
      %s30 = sphi 0, %s27
      %s31 = sphi 0, %s30
      %s47 = sphi 0, %s31
      %s51 = sphi 0, %s51
      %s53 = sphi 0, %s51
      %s54 = sphi 0, %s53
      %s68 = sphi 0, %s54
      %s72 = sphi 0, %s72
      %s74 = sphi 0, %s72
      %s75 = sphi 0, %s74
      %s89 = sphi 0, %s75
      %s93 = sphi 0, %s93
      %s95 = sphi 0, %s93
      %s96 = sphi 0, %s95
      %s110 = sphi 0, %s96
      %s114 = sphi 0, %s114
      %s116 = sphi 0, %s114
      %s117 = sphi 0, %s116
      %s131 = sphi 0, %s117
      %s137 = sphi 0, %s139
      %s140 = sphi 0, %s137
      %s141 = sphi 0, %s140
      %s157 = sphi 0, %s141
    $region4: #{spatial_gating_unit.1} parent=1 // loop_header_branch
      %20 = sbr.rel (%p18) target = $region8
    $region5: #{spatial_gating_unit.1} parent=1 // loop_body
      %s22 = ssub.s32 %s17, 1
      %s23 = ssub.s32 %s17, 2
      %s24 = sadd.s32 %s17, 1
      %s25 = ssub.s32 %s17, %s24
      %p26 = scmp.eq.s32.totalorder %s25, 0
      %s28 = sadd.s32 %s27, 1
      %s29 = scalar_select %p26, %s27, %s28
      %p32 = pneg %p26
      %p33 = scmp.eq.s32.totalorder %s17, 3
      %p34 = por %p32, %p33
      %p35 = scmp.ne.s32.totalorder %s27, %s30
      %p36 = scmp.eq.s32.totalorder %s17, 0
      %p37 = por %p35, %p36
      %p38 = scmp.ne.s32.totalorder %s27, %s30
      %p39 = scmp.eq.s32.totalorder %s22, 3
      %p40 = por %p38, %p39
      %p41 = scmp.ne.s32.totalorder %s30, %s31
      %p42 = scmp.eq.s32.totalorder %s22, 0
      %p43 = por %p41, %p42
      %p44 = scmp.ne.s32.totalorder %s30, %s31
      %p45 = scmp.eq.s32.totalorder %s23, 3
      %p46 = por %p44, %p45
      %p48 = scmp.ne.s32.totalorder %s31, %s47
      %p49 = scmp.eq.s32.totalorder %s23, 0
      %p50 = por %p48, %p49
      %s52 = sadd.s32 %s51, 1
      %p55 = scmp.eq.s32.totalorder %s17, 3
      %p56 = scmp.ne.s32.totalorder %s51, %s53
      %p57 = scmp.eq.s32.totalorder %s17, 0
      %p58 = por %p56, %p57
      %p59 = scmp.ne.s32.totalorder %s51, %s53
      %p60 = scmp.eq.s32.totalorder %s22, 3
      %p61 = por %p59, %p60
      %p62 = scmp.ne.s32.totalorder %s53, %s54
      %p63 = scmp.eq.s32.totalorder %s22, 0
      %p64 = por %p62, %p63
      %p65 = scmp.ne.s32.totalorder %s53, %s54
      %p66 = scmp.eq.s32.totalorder %s23, 3
      %p67 = por %p65, %p66
      %p69 = scmp.ne.s32.totalorder %s54, %s68
      %p70 = scmp.eq.s32.totalorder %s23, 0
      %p71 = por %p69, %p70
      %s73 = sadd.s32 %s72, 1
      %p76 = scmp.eq.s32.totalorder %s17, 3
      %p77 = scmp.ne.s32.totalorder %s72, %s74
      %p78 = scmp.eq.s32.totalorder %s17, 0
      %p79 = por %p77, %p78
      %p80 = scmp.ne.s32.totalorder %s72, %s74
      %p81 = scmp.eq.s32.totalorder %s22, 3
      %p82 = por %p80, %p81
      %p83 = scmp.ne.s32.totalorder %s74, %s75
      %p84 = scmp.eq.s32.totalorder %s22, 0
      %p85 = por %p83, %p84
      %p86 = scmp.ne.s32.totalorder %s74, %s75
      %p87 = scmp.eq.s32.totalorder %s23, 3
      %p88 = por %p86, %p87
      %p90 = scmp.ne.s32.totalorder %s75, %s89
      %p91 = scmp.eq.s32.totalorder %s23, 0
      %p92 = por %p90, %p91
      %s94 = sadd.s32 %s93, 1
      %p97 = scmp.eq.s32.totalorder %s17, 3
      %p98 = scmp.ne.s32.totalorder %s93, %s95
      %p99 = scmp.eq.s32.totalorder %s17, 0
      %p100 = por %p98, %p99
      %p101 = scmp.ne.s32.totalorder %s93, %s95
      %p102 = scmp.eq.s32.totalorder %s22, 3
      %p103 = por %p101, %p102
      %p104 = scmp.ne.s32.totalorder %s95, %s96
      %p105 = scmp.eq.s32.totalorder %s22, 0
      %p106 = por %p104, %p105
      %p107 = scmp.ne.s32.totalorder %s95, %s96
      %p108 = scmp.eq.s32.totalorder %s23, 3
      %p109 = por %p107, %p108
      %p111 = scmp.ne.s32.totalorder %s96, %s110
      %p112 = scmp.eq.s32.totalorder %s23, 0
      %p113 = por %p111, %p112
      %s115 = sadd.s32 %s114, 1
      %p118 = scmp.eq.s32.totalorder %s17, 3
      %p119 = scmp.ne.s32.totalorder %s114, %s116
      %p120 = scmp.eq.s32.totalorder %s17, 0
      %p121 = por %p119, %p120
      %p122 = scmp.ne.s32.totalorder %s114, %s116
      %p123 = scmp.eq.s32.totalorder %s22, 3
      %p124 = por %p122, %p123
      %p125 = scmp.ne.s32.totalorder %s116, %s117
      %p126 = scmp.eq.s32.totalorder %s22, 0
      %p127 = por %p125, %p126
      %p128 = scmp.ne.s32.totalorder %s116, %s117
      %p129 = scmp.eq.s32.totalorder %s23, 3
      %p130 = por %p128, %p129
      %p132 = scmp.ne.s32.totalorder %s117, %s131
      %p133 = scmp.eq.s32.totalorder %s23, 0
      %p134 = por %p132, %p133
      %s135 = ssub.s32 %s17, %s24
      %p136 = scmp.eq.s32.totalorder %s135, 0
      %s138 = sadd.s32 %s137, 1
      %s139 = scalar_select %p136, %s137, %s138
      %p142 = pneg %p136
      %p143 = scmp.eq.s32.totalorder %s17, 3
      %p144 = por %p142, %p143
      %p145 = scmp.ne.s32.totalorder %s137, %s140
      %p146 = scmp.eq.s32.totalorder %s17, 0
      %p147 = por %p145, %p146
      %p148 = scmp.ne.s32.totalorder %s137, %s140
      %p149 = scmp.eq.s32.totalorder %s22, 3
      %p150 = por %p148, %p149
      %p151 = scmp.ne.s32.totalorder %s140, %s141
      %p152 = scmp.eq.s32.totalorder %s22, 0
      %p153 = por %p151, %p152
      %p154 = scmp.ne.s32.totalorder %s140, %s141
      %p155 = scmp.eq.s32.totalorder %s23, 3
      %p156 = por %p154, %p155
      %p158 = scmp.ne.s32.totalorder %s141, %s157
      %p159 = scmp.eq.s32.totalorder %s23, 0
      %p160 = por %p158, %p159
      %p161 = scmp.le.s32.totalorder 1, %s17
      %p162 = scmp.lt.s32.totalorder %s17, 5
      %p163 = pnand %p161, %p162
      %p164 = pneg %p163
      // Predicated region
      $region9: #{spatial_gating_unit.1} parent=5 // pred_check
        _
      $region10: #{spatial_gating_unit.1} parent=5 // pred_check_branch
        %166 = sbr.rel (%p163) target = $region12
      $region11: #{spatial_gating_unit.1} parent=5 // pred_region
        %s167 = ssub.s32 %s17, 1
        // Predicated region
        $region13: #{spatial_gating_unit.1} parent=11 // pred_check
          %p168 = pneg %p64
        $region14: #{spatial_gating_unit.1} parent=11 // pred_check_branch
          %170 = sbr.rel (%p168) target = $region16
        $region15: #{spatial_gating_unit.1} parent=11 // pred_region
          _
        $region16: #{spatial_gating_unit.1} parent=11 // pred_fallthru
          _
        // Predicated region
        $region17: #{spatial_gating_unit.1} parent=11 // pred_check
          %p171 = pneg %p85
        $region18: #{spatial_gating_unit.1} parent=11 // pred_check_branch
          %173 = sbr.rel (%p171) target = $region20
        $region19: #{spatial_gating_unit.1} parent=11 // pred_region
          _
        $region20: #{spatial_gating_unit.1} parent=11 // pred_fallthru
          _
        // Predicated region
        $region21: #{spatial_gating_unit.1} parent=11 // pred_check
          %p174 = pneg %p106
        $region22: #{spatial_gating_unit.1} parent=11 // pred_check_branch
          %176 = sbr.rel (%p174) target = $region24
        $region23: #{spatial_gating_unit.1} parent=11 // pred_region
          _
        $region24: #{spatial_gating_unit.1} parent=11 // pred_fallthru
          _
        // Predicated region
        $region25: #{spatial_gating_unit.1} parent=11 // pred_check
          %p177 = pneg %p127
        $region26: #{spatial_gating_unit.1} parent=11 // pred_check_branch
          %179 = sbr.rel (%p177) target = $region28
        $region27: #{spatial_gating_unit.1} parent=11 // pred_region
          _
        $region28: #{spatial_gating_unit.1} parent=11 // pred_fallthru
          _
      $region12: #{spatial_gating_unit.1} parent=5 // pred_fallthru
        _
      %p180 = scmp.lt.s32.totalorder %s17, 4
      // Predicated region
      $region29: #{spatial_gating_unit.1} parent=5 // pred_check
        %p181 = pneg %p180
      $region30: #{spatial_gating_unit.1} parent=5 // pred_check_branch
        %183 = sbr.rel (%p181) target = $region32
      $region31: #{spatial_gating_unit.1} parent=5 // pred_region
        // Predicated region
        $region33: #{spatial_gating_unit.1} parent=31 // pred_check
          %p184 = pneg %p37
        $region34: #{spatial_gating_unit.1} parent=31 // pred_check_branch
          %186 = sbr.rel (%p184) target = $region36
        $region35: #{spatial_gating_unit.1} parent=31 // pred_region
          %s187 = sand.u32 %s27, 1
          %s188 = scalar_lea.sflag [#allocation3], %s187
          %s189 = sand.u32 %s27, 1
          %s190 = smul.addr %s189, 512
          %s191 = scalar_lea.vmem [#allocation2], %s190
          %s192 = smul.u32 2, %s17
          %s194 = ssub.s32 8192, 8192
          %195 = vsyncadd %s188, %s194
          %s196 = smul.addr %s192, 32
          %s197 = smul.addr %s196, 128
          %s198 = scalar_lea.hbm %s0, %s197
          %s199 = sshll.u32 %s191, 4
          %s200 = int_to_ptr.vmem [resolvable:$true] %s199
          %205 = dma.hbm_to_vmem [thread:$0]  %s198, 8192, %s200, %s188, 256, 256, 16
        $region36: #{spatial_gating_unit.1} parent=31 // pred_fallthru
          _
      $region32: #{spatial_gating_unit.1} parent=5 // pred_fallthru
        _
      %p206 = scmp.le.s32.totalorder 1, %s17
      %p207 = scmp.lt.s32.totalorder %s17, 5
      %p208 = pnand %p206, %p207
      %p209 = pneg %p208
      // Predicated region
      $region37: #{spatial_gating_unit.1} parent=5 // pred_check
        _
      $region38: #{spatial_gating_unit.1} parent=5 // pred_check_branch
        %211 = sbr.rel (%p208) target = $region40
      $region39: #{spatial_gating_unit.1} parent=5 // pred_region
        %s212 = ssub.s32 %s17, 1
        %s213 = sand.u32 %s30, 1
        %s214 = scalar_lea.sflag [#allocation3], %s213
        %s215 = sand.u32 %s30, 1
        %s216 = smul.addr %s215, 512
        %s217 = scalar_lea.vmem [#allocation2], %s216
        // Predicated region
        $region41: #{spatial_gating_unit.1} parent=39 // pred_check
          %p218 = pneg %p43
        $region42: #{spatial_gating_unit.1} parent=39 // pred_check_branch
          %220 = sbr.rel (%p218) target = $region44
        $region43: #{spatial_gating_unit.1} parent=39 // pred_region
          %221 = dma.done %s214, 8192
        $region44: #{spatial_gating_unit.1} parent=39 // pred_fallthru
          _
        %s222 = sand.u32 %s30, 1
        %s223 = scalar_lea.sflag [#allocation3], %s222
        %s224 = sand.u32 %s30, 1
        %s225 = smul.addr %s224, 512
        %s226 = scalar_lea.vmem [#allocation2], %s225
        %p227 = pneg %p43
        %p228 = pneg %p40
        %p229 = pneg %p64
        %p230 = pneg %p61
        %p231 = pneg %p85
        %p232 = pneg %p82
        %p233 = pneg %p106
        %p234 = pneg %p103
        %p235 = pneg %p127
        %p236 = pneg %p124
        %p237 = pneg %p153
        %p238 = pneg %p150
        %s239 = sand.u32 %s140, 1
        %s240 = scalar_lea.sflag [#allocation4], %s239
        %s241 = sand.u32 %s140, 1
        %s242 = smul.addr %s241, 256
        %s243 = scalar_lea.vmem [#allocation5], %s242
        %s244 = smul.u32 2, %s22
        %s245 = smul.u32 2, %s22
        %v246 = vld [vmem:[%s1] sm:$0xff]
        %v247 = vld [vmem:[%s1 + $0x8] sm:$0xff]
        %v248 = vld [vmem:[%s1 + $0x10] sm:$0xff]
        %v249 = vld [vmem:[%s1 + $0x18] sm:$0xff]
        %v250 = vld [vmem:[%s1 + $0x20] sm:$0xff]
        %v251 = vld [vmem:[%s1 + $0x28] sm:$0xff]
        %v252 = vld [vmem:[%s1 + $0x30] sm:$0xff]
        %v253 = vld [vmem:[%s1 + $0x38] sm:$0xff]
        %v254 = vld [vmem:[%s1 + $0x40] sm:$0xff]
        %v255 = vld [vmem:[%s1 + $0x48] sm:$0xff]
        %v256 = vld [vmem:[%s1 + $0x50] sm:$0xff]
        %v257 = vld [vmem:[%s1 + $0x58] sm:$0xff]
        %v258 = vld [vmem:[%s1 + $0x60] sm:$0xff]
        %v259 = vld [vmem:[%s1 + $0x68] sm:$0xff]
        %v260 = vld [vmem:[%s1 + $0x70] sm:$0xff]
        %v261 = vld [vmem:[%s1 + $0x78] sm:$0xff]
        %v262 = vld [vmem:[%s2] sm:$0x1]
        %v263 = vld [vmem:[%s3] sm:$0x1]
        %v264 = vld [vmem:[%s4] sm:$0xff]
        %v265 = vld [vmem:[%s4 + $0x8] sm:$0xff]
        %v266 = vld [vmem:[%s4 + $0x10] sm:$0xff]
        %v267 = vld [vmem:[%s4 + $0x18] sm:$0xff]
        %v268 = vld [vmem:[%s4 + $0x20] sm:$0xff]
        %v269 = vld [vmem:[%s4 + $0x28] sm:$0xff]
        %v270 = vld [vmem:[%s4 + $0x30] sm:$0xff]
        %v271 = vld [vmem:[%s4 + $0x38] sm:$0xff]
        %v272 = vld [vmem:[%s4 + $0x40] sm:$0xff]
        %v273 = vld [vmem:[%s4 + $0x48] sm:$0xff]
        %v274 = vld [vmem:[%s4 + $0x50] sm:$0xff]
        %v275 = vld [vmem:[%s4 + $0x58] sm:$0xff]
        %v276 = vld [vmem:[%s4 + $0x60] sm:$0xff]
        %v277 = vld [vmem:[%s4 + $0x68] sm:$0xff]
        %v278 = vld [vmem:[%s4 + $0x70] sm:$0xff]
        %v279 = vld [vmem:[%s4 + $0x78] sm:$0xff]
        %v280 = vld [vmem:[%s217 + $0x8] sm:$0xff]
        %v281 = vld [vmem:[%s217 + $0x18] sm:$0xff]
        %v282 = vld [vmem:[%s217 + $0x28] sm:$0xff]
        %v283 = vld [vmem:[%s217 + $0x38] sm:$0xff]
        %v284 = vld [vmem:[%s217 + $0x48] sm:$0xff]
        %v285 = vld [vmem:[%s217 + $0x58] sm:$0xff]
        %v286 = vld [vmem:[%s217 + $0x68] sm:$0xff]
        %v287 = vld [vmem:[%s217 + $0x78] sm:$0xff]
        %v288 = vld [vmem:[%s217 + $0x88] sm:$0xff]
        %v289 = vld [vmem:[%s217 + $0x98] sm:$0xff]
        %v290 = vld [vmem:[%s217 + $0xa8] sm:$0xff]
        %v291 = vld [vmem:[%s217 + $0xb8] sm:$0xff]
        %v292 = vld [vmem:[%s217 + $0xc8] sm:$0xff]
        %v293 = vld [vmem:[%s217 + $0xd8] sm:$0xff]
        %v294 = vld [vmem:[%s217 + $0xe8] sm:$0xff]
        %v295 = vld [vmem:[%s217 + $0xf8] sm:$0xff]
        %296 = vadd.xlane.f32.xlu0 %v280
        %v297 = vpop.xlane.xlu0 %296
        %298 = vadd.xlane.f32.xlu0 %v281
        %v299 = vpop.xlane.xlu0 %298
        %300 = vadd.xlane.f32.xlu0 %v282
        %v301 = vpop.xlane.xlu0 %300
        %302 = vadd.xlane.f32.xlu0 %v283
        %v303 = vpop.xlane.xlu0 %302
        %304 = vadd.xlane.f32.xlu0 %v284
        %v305 = vpop.xlane.xlu0 %304
        %306 = vadd.xlane.f32.xlu0 %v285
        %v307 = vpop.xlane.xlu0 %306
        %308 = vadd.xlane.f32.xlu0 %v286
        %v309 = vpop.xlane.xlu0 %308
        %310 = vadd.xlane.f32.xlu0 %v287
        %v311 = vpop.xlane.xlu0 %310
        %312 = vadd.xlane.f32.xlu0 %v288
        %v313 = vpop.xlane.xlu0 %312
        %314 = vadd.xlane.f32.xlu0 %v289
        %v315 = vpop.xlane.xlu0 %314
        %316 = vadd.xlane.f32.xlu0 %v290
        %v317 = vpop.xlane.xlu0 %316
        %318 = vadd.xlane.f32.xlu0 %v291
        %v319 = vpop.xlane.xlu0 %318
        %320 = vadd.xlane.f32.xlu0 %v292
        %v321 = vpop.xlane.xlu0 %320
        %322 = vadd.xlane.f32.xlu0 %v293
        %v323 = vpop.xlane.xlu0 %322
        %324 = vadd.xlane.f32.xlu0 %v294
        %v325 = vpop.xlane.xlu0 %324
        %326 = vadd.xlane.f32.xlu0 %v295
        %v327 = vpop.xlane.xlu0 %326
        %v328 = vmul.f32 %v297, 0.0078125
        %v329 = vmul.f32 %v299, 0.0078125
        %v330 = vmul.f32 %v301, 0.0078125
        %v331 = vmul.f32 %v303, 0.0078125
        %v332 = vmul.f32 %v305, 0.0078125
        %v333 = vmul.f32 %v307, 0.0078125
        %v334 = vmul.f32 %v309, 0.0078125
        %v335 = vmul.f32 %v311, 0.0078125
        %v336 = vmul.f32 %v313, 0.0078125
        %v337 = vmul.f32 %v315, 0.0078125
        %v338 = vmul.f32 %v317, 0.0078125
        %v339 = vmul.f32 %v319, 0.0078125
        %v340 = vmul.f32 %v321, 0.0078125
        %v341 = vmul.f32 %v323, 0.0078125
        %v342 = vmul.f32 %v325, 0.0078125
        %v343 = vmul.f32 %v327, 0.0078125
        %v344 = vsub.f32 %v280, %v328
        %v345 = vsub.f32 %v281, %v329
        %v346 = vsub.f32 %v282, %v330
        %v347 = vsub.f32 %v283, %v331
        %v348 = vsub.f32 %v284, %v332
        %v349 = vsub.f32 %v285, %v333
        %v350 = vsub.f32 %v286, %v334
        %v351 = vsub.f32 %v287, %v335
        %v352 = vsub.f32 %v288, %v336
        %v353 = vsub.f32 %v289, %v337
        %v354 = vsub.f32 %v290, %v338
        %v355 = vsub.f32 %v291, %v339
        %v356 = vsub.f32 %v292, %v340
        %v357 = vsub.f32 %v293, %v341
        %v358 = vsub.f32 %v294, %v342
        %v359 = vsub.f32 %v295, %v343
        %v360 = vmul.f32 %v344, %v344
        %v361 = vmul.f32 %v345, %v345
        %v362 = vmul.f32 %v346, %v346
        %v363 = vmul.f32 %v347, %v347
        %v364 = vmul.f32 %v348, %v348
        %v365 = vmul.f32 %v349, %v349
        %v366 = vmul.f32 %v350, %v350
        %v367 = vmul.f32 %v351, %v351
        %v368 = vmul.f32 %v352, %v352
        %v369 = vmul.f32 %v353, %v353
        %v370 = vmul.f32 %v354, %v354
        %v371 = vmul.f32 %v355, %v355
        %v372 = vmul.f32 %v356, %v356
        %v373 = vmul.f32 %v357, %v357
        %v374 = vmul.f32 %v358, %v358
        %v375 = vmul.f32 %v359, %v359
        %376 = vadd.xlane.f32.xlu0 %v360
        %v377 = vpop.xlane.xlu0 %376
        %378 = vadd.xlane.f32.xlu0 %v361
        %v379 = vpop.xlane.xlu0 %378
        %380 = vadd.xlane.f32.xlu0 %v362
        %v381 = vpop.xlane.xlu0 %380
        %382 = vadd.xlane.f32.xlu0 %v363
        %v383 = vpop.xlane.xlu0 %382
        %384 = vadd.xlane.f32.xlu0 %v364
        %v385 = vpop.xlane.xlu0 %384
        %386 = vadd.xlane.f32.xlu0 %v365
        %v387 = vpop.xlane.xlu0 %386
        %388 = vadd.xlane.f32.xlu0 %v366
        %v389 = vpop.xlane.xlu0 %388
        %390 = vadd.xlane.f32.xlu0 %v367
        %v391 = vpop.xlane.xlu0 %390
        %392 = vadd.xlane.f32.xlu0 %v368
        %v393 = vpop.xlane.xlu0 %392
        %394 = vadd.xlane.f32.xlu0 %v369
        %v395 = vpop.xlane.xlu0 %394
        %396 = vadd.xlane.f32.xlu0 %v370
        %v397 = vpop.xlane.xlu0 %396
        %398 = vadd.xlane.f32.xlu0 %v371
        %v399 = vpop.xlane.xlu0 %398
        %400 = vadd.xlane.f32.xlu0 %v372
        %v401 = vpop.xlane.xlu0 %400
        %402 = vadd.xlane.f32.xlu0 %v373
        %v403 = vpop.xlane.xlu0 %402
        %404 = vadd.xlane.f32.xlu0 %v374
        %v405 = vpop.xlane.xlu0 %404
        %406 = vadd.xlane.f32.xlu0 %v375
        %v407 = vpop.xlane.xlu0 %406
        %v408 = vmul.f32 %v377, 0.0078125
        %v409 = vmul.f32 %v379, 0.0078125
        %v410 = vmul.f32 %v381, 0.0078125
        %v411 = vmul.f32 %v383, 0.0078125
        %v412 = vmul.f32 %v385, 0.0078125
        %v413 = vmul.f32 %v387, 0.0078125
        %v414 = vmul.f32 %v389, 0.0078125
        %v415 = vmul.f32 %v391, 0.0078125
        %v416 = vmul.f32 %v393, 0.0078125
        %v417 = vmul.f32 %v395, 0.0078125
        %v418 = vmul.f32 %v397, 0.0078125
        %v419 = vmul.f32 %v399, 0.0078125
        %v420 = vmul.f32 %v401, 0.0078125
        %v421 = vmul.f32 %v403, 0.0078125
        %v422 = vmul.f32 %v405, 0.0078125
        %v423 = vmul.f32 %v407, 0.0078125
        %v424 = vadd.f32 %v408, 1e-05
        %v425 = vadd.f32 %v409, 1e-05
        %v426 = vadd.f32 %v410, 1e-05
        %v427 = vadd.f32 %v411, 1e-05
        %v428 = vadd.f32 %v412, 1e-05
        %v429 = vadd.f32 %v413, 1e-05
        %v430 = vadd.f32 %v414, 1e-05
        %v431 = vadd.f32 %v415, 1e-05
        %v432 = vadd.f32 %v416, 1e-05
        %v433 = vadd.f32 %v417, 1e-05
        %v434 = vadd.f32 %v418, 1e-05
        %v435 = vadd.f32 %v419, 1e-05
        %v436 = vadd.f32 %v420, 1e-05
        %v437 = vadd.f32 %v421, 1e-05
        %v438 = vadd.f32 %v422, 1e-05
        %v439 = vadd.f32 %v423, 1e-05
        %v440 = vrsqrt.pop %v424
        %v441 = vrsqrt.pop %v425
        %v442 = vrsqrt.pop %v426
        %v443 = vrsqrt.pop %v427
        %v444 = vrsqrt.pop %v428
        %v445 = vrsqrt.pop %v429
        %v446 = vrsqrt.pop %v430
        %v447 = vrsqrt.pop %v431
        %v448 = vrsqrt.pop %v432
        %v449 = vrsqrt.pop %v433
        %v450 = vrsqrt.pop %v434
        %v451 = vrsqrt.pop %v435
        %v452 = vrsqrt.pop %v436
        %v453 = vrsqrt.pop %v437
        %v454 = vrsqrt.pop %v438
        %v455 = vrsqrt.pop %v439
        %v456 = vmul.f32 %v344, %v440
        %v457 = vmul.f32 %v345, %v441
        %v458 = vmul.f32 %v346, %v442
        %v459 = vmul.f32 %v347, %v443
        %v460 = vmul.f32 %v348, %v444
        %v461 = vmul.f32 %v349, %v445
        %v462 = vmul.f32 %v350, %v446
        %v463 = vmul.f32 %v351, %v447
        %v464 = vmul.f32 %v352, %v448
        %v465 = vmul.f32 %v353, %v449
        %v466 = vmul.f32 %v354, %v450
        %v467 = vmul.f32 %v355, %v451
        %v468 = vmul.f32 %v356, %v452
        %v469 = vmul.f32 %v357, %v453
        %v470 = vmul.f32 %v358, %v454
        %v471 = vmul.f32 %v359, %v455
        %v473 = vlaneseq
        %v474 = vshrl.u32 %v473, 7
        %v475 = vsub.s32 0, %v474
        %v476 = vrot.slane %v262, %v475
        %v478 = vmul.f32 %v456, %v476
        %v479 = vmul.f32 %v457, %v476
        %v480 = vmul.f32 %v458, %v476
        %v481 = vmul.f32 %v459, %v476
        %v482 = vmul.f32 %v460, %v476
        %v483 = vmul.f32 %v461, %v476
        %v484 = vmul.f32 %v462, %v476
        %v485 = vmul.f32 %v463, %v476
        %v486 = vmul.f32 %v464, %v476
        %v487 = vmul.f32 %v465, %v476
        %v488 = vmul.f32 %v466, %v476
        %v489 = vmul.f32 %v467, %v476
        %v490 = vmul.f32 %v468, %v476
        %v491 = vmul.f32 %v469, %v476
        %v492 = vmul.f32 %v470, %v476
        %v493 = vmul.f32 %v471, %v476
        %v495 = vlaneseq
        %v496 = vshrl.u32 %v495, 7
        %v497 = vsub.s32 0, %v496
        %v498 = vrot.slane %v263, %v497
        %v500 = vadd.f32 %v478, %v498
        %v501 = vadd.f32 %v479, %v498
        %v502 = vadd.f32 %v480, %v498
        %v503 = vadd.f32 %v481, %v498
        %v504 = vadd.f32 %v482, %v498
        %v505 = vadd.f32 %v483, %v498
        %v506 = vadd.f32 %v484, %v498
        %v507 = vadd.f32 %v485, %v498
        %v508 = vadd.f32 %v486, %v498
        %v509 = vadd.f32 %v487, %v498
        %v510 = vadd.f32 %v488, %v498
        %v511 = vadd.f32 %v489, %v498
        %v512 = vadd.f32 %v490, %v498
        %v513 = vadd.f32 %v491, %v498
        %v514 = vadd.f32 %v492, %v498
        %v515 = vadd.f32 %v493, %v498
        %517 = vset.pattern.permute.xlu0 0
        %518 = vperm.xlu0 %517, %v264
        %v519 = vpop.permute.xlu0 %518
        %522 = vset.pattern.permute.xlu0 0
        %523 = vperm.xlu0 %522, %v265
        %v524 = vpop.permute.xlu0 %523
        %527 = vset.pattern.permute.xlu0 0
        %528 = vperm.xlu0 %527, %v266
        %v529 = vpop.permute.xlu0 %528
        %532 = vset.pattern.permute.xlu0 0
        %533 = vperm.xlu0 %532, %v267
        %v534 = vpop.permute.xlu0 %533
        %537 = vset.pattern.permute.xlu0 0
        %538 = vperm.xlu0 %537, %v268
        %v539 = vpop.permute.xlu0 %538
        %542 = vset.pattern.permute.xlu0 0
        %543 = vperm.xlu0 %542, %v269
        %v544 = vpop.permute.xlu0 %543
        %547 = vset.pattern.permute.xlu0 0
        %548 = vperm.xlu0 %547, %v270
        %v549 = vpop.permute.xlu0 %548
        %552 = vset.pattern.permute.xlu0 0
        %553 = vperm.xlu0 %552, %v271
        %v554 = vpop.permute.xlu0 %553
        %557 = vset.pattern.permute.xlu0 0
        %558 = vperm.xlu0 %557, %v272
        %v559 = vpop.permute.xlu0 %558
        %562 = vset.pattern.permute.xlu0 0
        %563 = vperm.xlu0 %562, %v273
        %v564 = vpop.permute.xlu0 %563
        %567 = vset.pattern.permute.xlu0 0
        %568 = vperm.xlu0 %567, %v274
        %v569 = vpop.permute.xlu0 %568
        %572 = vset.pattern.permute.xlu0 0
        %573 = vperm.xlu0 %572, %v275
        %v574 = vpop.permute.xlu0 %573
        %577 = vset.pattern.permute.xlu0 0
        %578 = vperm.xlu0 %577, %v276
        %v579 = vpop.permute.xlu0 %578
        %582 = vset.pattern.permute.xlu0 0
        %583 = vperm.xlu0 %582, %v277
        %v584 = vpop.permute.xlu0 %583
        %587 = vset.pattern.permute.xlu0 0
        %588 = vperm.xlu0 %587, %v278
        %v589 = vpop.permute.xlu0 %588
        %592 = vset.pattern.permute.xlu0 0
        %593 = vperm.xlu0 %592, %v279
        %v594 = vpop.permute.xlu0 %593
        %596 = vmatprep.subr.mxu0 0.0
        %597 = vmatpush1.msra.mxu0 %v500
        %598 = vmatprep.subr.mxu0 0.0
        %599 = vmatpush1.msra.mxu0 %v501
        %600 = vmatprep.subr.mxu0 0.0
        %601 = vmatpush1.msra.mxu0 %v502
        %602 = vmatprep.subr.mxu0 0.0
        %603 = vmatpush1.msra.mxu0 %v503
        %604 = vmatprep.subr.mxu0 0.0
        %605 = vmatpush1.msra.mxu0 %v504
        %606 = vmatprep.subr.mxu0 0.0
        %607 = vmatpush1.msra.mxu0 %v505
        %608 = vmatprep.subr.mxu0 0.0
        %609 = vmatpush1.msra.mxu0 %v506
        %610 = vmatprep.subr.mxu0 0.0
        %611 = vmatpush1.msra.mxu0 %v507
        %612 = vmatprep.subr.mxu0 0.0
        %613 = vmatpush1.msra.mxu0 %v508
        %614 = vmatprep.subr.mxu0 0.0
        %615 = vmatpush1.msra.mxu0 %v509
        %616 = vmatprep.subr.mxu0 0.0
        %617 = vmatpush1.msra.mxu0 %v510
        %618 = vmatprep.subr.mxu0 0.0
        %619 = vmatpush1.msra.mxu0 %v511
        %620 = vmatprep.subr.mxu0 0.0
        %621 = vmatpush1.msra.mxu0 %v512
        %622 = vmatprep.subr.mxu0 0.0
        %623 = vmatpush1.msra.mxu0 %v513
        %624 = vmatprep.subr.mxu0 0.0
        %625 = vmatpush1.msra.mxu0 %v514
        %626 = vmatprep.subr.mxu0 0.0
        %627 = vmatpush1.msra.mxu0 %v515
        %628 = vmatprep.subr.mxu0 0.0
        %629 = vmatpush1.msra.mxu0 0.0
        %630 = vmatprep.subr.mxu0 0.0
        %631 = vmatpush1.msra.mxu0 0.0
        %632 = vmatprep.subr.mxu0 0.0
        %633 = vmatpush1.msra.mxu0 0.0
        %634 = vmatprep.subr.mxu0 0.0
        %635 = vmatpush1.msra.mxu0 0.0
        %636 = vmatprep.subr.mxu0 0.0
        %637 = vmatpush1.msra.mxu0 0.0
        %638 = vmatprep.subr.mxu0 0.0
        %639 = vmatpush1.msra.mxu0 0.0
        %640 = vmatprep.subr.mxu0 0.0
        %641 = vmatpush1.msra.mxu0 0.0
        %642 = vmatprep.subr.mxu0 0.0
        %643 = vmatpush1.msra.mxu0 0.0
        %644 = vmatprep.subr.mxu0 0.0
        %645 = vmatpush1.msra.mxu0 0.0
        %646 = vmatprep.subr.mxu0 0.0
        %647 = vmatpush1.msra.mxu0 0.0
        %648 = vmatprep.subr.mxu0 0.0
        %649 = vmatpush1.msra.mxu0 0.0
        %650 = vmatprep.subr.mxu0 0.0
        %651 = vmatpush1.msra.mxu0 0.0
        %652 = vmatprep.subr.mxu0 0.0
        %653 = vmatpush1.msra.mxu0 0.0
        %654 = vmatprep.subr.mxu0 0.0
        %655 = vmatpush1.msra.mxu0 0.0
        %656 = vmatprep.subr.mxu0 0.0
        %657 = vmatpush1.msra.mxu0 0.0
        %658 = vmatprep.subr.mxu0 0.0
        %659 = vmatpush1.msra.mxu0 0.0
        %660 = vmatprep.mubr.f32.mxu0 0.0
        %661 = vmatmul.mubr.f32.gmra.mrb[0].mxu0 %v246
        %v662 = vpop.f32.mrb[0].mxu0
        %v663 = vadd.f32 %v519, %v662
        %v664 = vpop.f32.mrb[0].mxu0
        %665 = vmatprep.mubr.f32.mxu0 0.0
        %666 = vmatmul.mubr.f32.gmra.mrb[0].mxu0 %v247
        %v667 = vpop.f32.mrb[0].mxu0
        %v668 = vadd.f32 %v524, %v667
        %v669 = vpop.f32.mrb[0].mxu0
        %670 = vmatprep.mubr.f32.mxu0 0.0
        %671 = vmatmul.mubr.f32.gmra.mrb[0].mxu0 %v248
        %v672 = vpop.f32.mrb[0].mxu0
        %v673 = vadd.f32 %v529, %v672
        %v674 = vpop.f32.mrb[0].mxu0
        %675 = vmatprep.mubr.f32.mxu0 0.0
        %676 = vmatmul.mubr.f32.gmra.mrb[0].mxu0 %v249
        %v677 = vpop.f32.mrb[0].mxu0
        %v678 = vadd.f32 %v534, %v677
        %v679 = vpop.f32.mrb[0].mxu0
        %680 = vmatprep.mubr.f32.mxu0 0.0
        %681 = vmatmul.mubr.f32.gmra.mrb[0].mxu0 %v250
        %v682 = vpop.f32.mrb[0].mxu0
        %v683 = vadd.f32 %v539, %v682
        %v684 = vpop.f32.mrb[0].mxu0
        %685 = vmatprep.mubr.f32.mxu0 0.0
        %686 = vmatmul.mubr.f32.gmra.mrb[0].mxu0 %v251
        %v687 = vpop.f32.mrb[0].mxu0
        %v688 = vadd.f32 %v544, %v687
        %v689 = vpop.f32.mrb[0].mxu0
        %690 = vmatprep.mubr.f32.mxu0 0.0
        %691 = vmatmul.mubr.f32.gmra.mrb[0].mxu0 %v252
        %v692 = vpop.f32.mrb[0].mxu0
        %v693 = vadd.f32 %v549, %v692
        %v694 = vpop.f32.mrb[0].mxu0
        %695 = vmatprep.mubr.f32.mxu0 0.0
        %696 = vmatmul.mubr.f32.gmra.mrb[0].mxu0 %v253
        %v697 = vpop.f32.mrb[0].mxu0
        %v698 = vadd.f32 %v554, %v697
        %v699 = vpop.f32.mrb[0].mxu0
        %700 = vmatprep.mubr.f32.mxu0 0.0
        %701 = vmatmul.mubr.f32.gmra.mrb[0].mxu0 %v254
        %v702 = vpop.f32.mrb[0].mxu0
        %v703 = vadd.f32 %v559, %v702
        %v704 = vpop.f32.mrb[0].mxu0
        %705 = vmatprep.mubr.f32.mxu0 0.0
        %706 = vmatmul.mubr.f32.gmra.mrb[0].mxu0 %v255
        %v707 = vpop.f32.mrb[0].mxu0
        %v708 = vadd.f32 %v564, %v707
        %v709 = vpop.f32.mrb[0].mxu0
        %710 = vmatprep.mubr.f32.mxu0 0.0
        %711 = vmatmul.mubr.f32.gmra.mrb[0].mxu0 %v256
        %v712 = vpop.f32.mrb[0].mxu0
        %v713 = vadd.f32 %v569, %v712
        %v714 = vpop.f32.mrb[0].mxu0
        %715 = vmatprep.mubr.f32.mxu0 0.0
        %716 = vmatmul.mubr.f32.gmra.mrb[0].mxu0 %v257
        %v717 = vpop.f32.mrb[0].mxu0
        %v718 = vadd.f32 %v574, %v717
        %v719 = vpop.f32.mrb[0].mxu0
        %720 = vmatprep.mubr.f32.mxu0 0.0
        %721 = vmatmul.mubr.f32.gmra.mrb[0].mxu0 %v258
        %v722 = vpop.f32.mrb[0].mxu0
        %v723 = vadd.f32 %v579, %v722
        %v724 = vpop.f32.mrb[0].mxu0
        %725 = vmatprep.mubr.f32.mxu0 0.0
        %726 = vmatmul.mubr.f32.gmra.mrb[0].mxu0 %v259
        %v727 = vpop.f32.mrb[0].mxu0
        %v728 = vadd.f32 %v584, %v727
        %v729 = vpop.f32.mrb[0].mxu0
        %730 = vmatprep.mubr.f32.mxu0 0.0
        %731 = vmatmul.mubr.f32.gmra.mrb[0].mxu0 %v260
        %v732 = vpop.f32.mrb[0].mxu0
        %v733 = vadd.f32 %v589, %v732
        %v734 = vpop.f32.mrb[0].mxu0
        %735 = vmatprep.mubr.f32.mxu0 0.0
        %736 = vmatmul.mubr.f32.gmra.mrb[0].mxu0 %v261
        %v737 = vpop.f32.mrb[0].mxu0
        %v738 = vadd.f32 %v594, %v737
        %v739 = vpop.f32.mrb[0].mxu0
        %740 = vdwg.mxu0
        %v741 = vld [vmem:[%s217] sm:$0xff]
        %v742 = vld [vmem:[%s217 + $0x10] sm:$0xff]
        %v743 = vld [vmem:[%s217 + $0x20] sm:$0xff]
        %v744 = vld [vmem:[%s217 + $0x30] sm:$0xff]
        %v745 = vld [vmem:[%s217 + $0x40] sm:$0xff]
        %v746 = vld [vmem:[%s217 + $0x50] sm:$0xff]
        %v747 = vld [vmem:[%s217 + $0x60] sm:$0xff]
        %v748 = vld [vmem:[%s217 + $0x70] sm:$0xff]
        %v749 = vld [vmem:[%s217 + $0x80] sm:$0xff]
        %v750 = vld [vmem:[%s217 + $0x90] sm:$0xff]
        %v751 = vld [vmem:[%s217 + $0xa0] sm:$0xff]
        %v752 = vld [vmem:[%s217 + $0xb0] sm:$0xff]
        %v753 = vld [vmem:[%s217 + $0xc0] sm:$0xff]
        %v754 = vld [vmem:[%s217 + $0xd0] sm:$0xff]
        %v755 = vld [vmem:[%s217 + $0xe0] sm:$0xff]
        %v756 = vld [vmem:[%s217 + $0xf0] sm:$0xff]
        %v757 = vmul.f32 %v741, %v663
        %v758 = vmul.f32 %v742, %v668
        %v759 = vmul.f32 %v743, %v673
        %v760 = vmul.f32 %v744, %v678
        %v761 = vmul.f32 %v745, %v683
        %v762 = vmul.f32 %v746, %v688
        %v763 = vmul.f32 %v747, %v693
        %v764 = vmul.f32 %v748, %v698
        %v765 = vmul.f32 %v749, %v703
        %v766 = vmul.f32 %v750, %v708
        %v767 = vmul.f32 %v751, %v713
        %v768 = vmul.f32 %v752, %v718
        %v769 = vmul.f32 %v753, %v723
        %v770 = vmul.f32 %v754, %v728
        %v771 = vmul.f32 %v755, %v733
        %v772 = vmul.f32 %v756, %v738
        %773 = vst [vmem:[%s243] sm:$0xff] %v757
        %774 = vst [vmem:[%s243 + $0x8] sm:$0xff] %v758
        %775 = vst [vmem:[%s243 + $0x10] sm:$0xff] %v759
        %776 = vst [vmem:[%s243 + $0x18] sm:$0xff] %v760
        %777 = vst [vmem:[%s243 + $0x20] sm:$0xff] %v761
        %778 = vst [vmem:[%s243 + $0x28] sm:$0xff] %v762
        %779 = vst [vmem:[%s243 + $0x30] sm:$0xff] %v763
        %780 = vst [vmem:[%s243 + $0x38] sm:$0xff] %v764
        %781 = vst [vmem:[%s243 + $0x40] sm:$0xff] %v765
        %782 = vst [vmem:[%s243 + $0x48] sm:$0xff] %v766
        %783 = vst [vmem:[%s243 + $0x50] sm:$0xff] %v767
        %784 = vst [vmem:[%s243 + $0x58] sm:$0xff] %v768
        %785 = vst [vmem:[%s243 + $0x60] sm:$0xff] %v769
        %786 = vst [vmem:[%s243 + $0x68] sm:$0xff] %v770
        %787 = vst [vmem:[%s243 + $0x70] sm:$0xff] %v771
        %788 = vst [vmem:[%s243 + $0x78] sm:$0xff] %v772
        %s789 = scalar_lea.vmem %s217, 256 [#allocation2]
        %v790 = vld [vmem:[%s789 + $0x8] sm:$0xff]
        %v791 = vld [vmem:[%s789 + $0x18] sm:$0xff]
        %v792 = vld [vmem:[%s789 + $0x28] sm:$0xff]
        %v793 = vld [vmem:[%s789 + $0x38] sm:$0xff]
        %v794 = vld [vmem:[%s789 + $0x48] sm:$0xff]
        %v795 = vld [vmem:[%s789 + $0x58] sm:$0xff]
        %v796 = vld [vmem:[%s789 + $0x68] sm:$0xff]
        %v797 = vld [vmem:[%s789 + $0x78] sm:$0xff]
        %v798 = vld [vmem:[%s789 + $0x88] sm:$0xff]
        %v799 = vld [vmem:[%s789 + $0x98] sm:$0xff]
        %v800 = vld [vmem:[%s789 + $0xa8] sm:$0xff]
        %v801 = vld [vmem:[%s789 + $0xb8] sm:$0xff]
        %v802 = vld [vmem:[%s789 + $0xc8] sm:$0xff]
        %v803 = vld [vmem:[%s789 + $0xd8] sm:$0xff]
        %v804 = vld [vmem:[%s789 + $0xe8] sm:$0xff]
        %v805 = vld [vmem:[%s789 + $0xf8] sm:$0xff]
        %806 = vadd.xlane.f32.xlu0 %v790
        %v807 = vpop.xlane.xlu0 %806
        %808 = vadd.xlane.f32.xlu0 %v791
        %v809 = vpop.xlane.xlu0 %808
        %810 = vadd.xlane.f32.xlu0 %v792
        %v811 = vpop.xlane.xlu0 %810
        %812 = vadd.xlane.f32.xlu0 %v793
        %v813 = vpop.xlane.xlu0 %812
        %814 = vadd.xlane.f32.xlu0 %v794
        %v815 = vpop.xlane.xlu0 %814
        %816 = vadd.xlane.f32.xlu0 %v795
        %v817 = vpop.xlane.xlu0 %816
        %818 = vadd.xlane.f32.xlu0 %v796
        %v819 = vpop.xlane.xlu0 %818
        %820 = vadd.xlane.f32.xlu0 %v797
        %v821 = vpop.xlane.xlu0 %820
        %822 = vadd.xlane.f32.xlu0 %v798
        %v823 = vpop.xlane.xlu0 %822
        %824 = vadd.xlane.f32.xlu0 %v799
        %v825 = vpop.xlane.xlu0 %824
        %826 = vadd.xlane.f32.xlu0 %v800
        %v827 = vpop.xlane.xlu0 %826
        %828 = vadd.xlane.f32.xlu0 %v801
        %v829 = vpop.xlane.xlu0 %828
        %830 = vadd.xlane.f32.xlu0 %v802
        %v831 = vpop.xlane.xlu0 %830
        %832 = vadd.xlane.f32.xlu0 %v803
        %v833 = vpop.xlane.xlu0 %832
        %834 = vadd.xlane.f32.xlu0 %v804
        %v835 = vpop.xlane.xlu0 %834
        %836 = vadd.xlane.f32.xlu0 %v805
        %v837 = vpop.xlane.xlu0 %836
        %v838 = vmul.f32 %v807, 0.0078125
        %v839 = vmul.f32 %v809, 0.0078125
        %v840 = vmul.f32 %v811, 0.0078125
        %v841 = vmul.f32 %v813, 0.0078125
        %v842 = vmul.f32 %v815, 0.0078125
        %v843 = vmul.f32 %v817, 0.0078125
        %v844 = vmul.f32 %v819, 0.0078125
        %v845 = vmul.f32 %v821, 0.0078125
        %v846 = vmul.f32 %v823, 0.0078125
        %v847 = vmul.f32 %v825, 0.0078125
        %v848 = vmul.f32 %v827, 0.0078125
        %v849 = vmul.f32 %v829, 0.0078125
        %v850 = vmul.f32 %v831, 0.0078125
        %v851 = vmul.f32 %v833, 0.0078125
        %v852 = vmul.f32 %v835, 0.0078125
        %v853 = vmul.f32 %v837, 0.0078125
        %v854 = vsub.f32 %v790, %v838
        %v855 = vsub.f32 %v791, %v839
        %v856 = vsub.f32 %v792, %v840
        %v857 = vsub.f32 %v793, %v841
        %v858 = vsub.f32 %v794, %v842
        %v859 = vsub.f32 %v795, %v843
        %v860 = vsub.f32 %v796, %v844
        %v861 = vsub.f32 %v797, %v845
        %v862 = vsub.f32 %v798, %v846
        %v863 = vsub.f32 %v799, %v847
        %v864 = vsub.f32 %v800, %v848
        %v865 = vsub.f32 %v801, %v849
        %v866 = vsub.f32 %v802, %v850
        %v867 = vsub.f32 %v803, %v851
        %v868 = vsub.f32 %v804, %v852
        %v869 = vsub.f32 %v805, %v853
        %v870 = vmul.f32 %v854, %v854
        %v871 = vmul.f32 %v855, %v855
        %v872 = vmul.f32 %v856, %v856
        %v873 = vmul.f32 %v857, %v857
        %v874 = vmul.f32 %v858, %v858
        %v875 = vmul.f32 %v859, %v859
        %v876 = vmul.f32 %v860, %v860
        %v877 = vmul.f32 %v861, %v861
        %v878 = vmul.f32 %v862, %v862
        %v879 = vmul.f32 %v863, %v863
        %v880 = vmul.f32 %v864, %v864
        %v881 = vmul.f32 %v865, %v865
        %v882 = vmul.f32 %v866, %v866
        %v883 = vmul.f32 %v867, %v867
        %v884 = vmul.f32 %v868, %v868
        %v885 = vmul.f32 %v869, %v869
        %886 = vadd.xlane.f32.xlu0 %v870
        %v887 = vpop.xlane.xlu0 %886
        %888 = vadd.xlane.f32.xlu0 %v871
        %v889 = vpop.xlane.xlu0 %888
        %890 = vadd.xlane.f32.xlu0 %v872
        %v891 = vpop.xlane.xlu0 %890
        %892 = vadd.xlane.f32.xlu0 %v873
        %v893 = vpop.xlane.xlu0 %892
        %894 = vadd.xlane.f32.xlu0 %v874
        %v895 = vpop.xlane.xlu0 %894
        %896 = vadd.xlane.f32.xlu0 %v875
        %v897 = vpop.xlane.xlu0 %896
        %898 = vadd.xlane.f32.xlu0 %v876
        %v899 = vpop.xlane.xlu0 %898
        %900 = vadd.xlane.f32.xlu0 %v877
        %v901 = vpop.xlane.xlu0 %900
        %902 = vadd.xlane.f32.xlu0 %v878
        %v903 = vpop.xlane.xlu0 %902
        %904 = vadd.xlane.f32.xlu0 %v879
        %v905 = vpop.xlane.xlu0 %904
        %906 = vadd.xlane.f32.xlu0 %v880
        %v907 = vpop.xlane.xlu0 %906
        %908 = vadd.xlane.f32.xlu0 %v881
        %v909 = vpop.xlane.xlu0 %908
        %910 = vadd.xlane.f32.xlu0 %v882
        %v911 = vpop.xlane.xlu0 %910
        %912 = vadd.xlane.f32.xlu0 %v883
        %v913 = vpop.xlane.xlu0 %912
        %914 = vadd.xlane.f32.xlu0 %v884
        %v915 = vpop.xlane.xlu0 %914
        %916 = vadd.xlane.f32.xlu0 %v885
        %v917 = vpop.xlane.xlu0 %916
        %v918 = vmul.f32 %v887, 0.0078125
        %v919 = vmul.f32 %v889, 0.0078125
        %v920 = vmul.f32 %v891, 0.0078125
        %v921 = vmul.f32 %v893, 0.0078125
        %v922 = vmul.f32 %v895, 0.0078125
        %v923 = vmul.f32 %v897, 0.0078125
        %v924 = vmul.f32 %v899, 0.0078125
        %v925 = vmul.f32 %v901, 0.0078125
        %v926 = vmul.f32 %v903, 0.0078125
        %v927 = vmul.f32 %v905, 0.0078125
        %v928 = vmul.f32 %v907, 0.0078125
        %v929 = vmul.f32 %v909, 0.0078125
        %v930 = vmul.f32 %v911, 0.0078125
        %v931 = vmul.f32 %v913, 0.0078125
        %v932 = vmul.f32 %v915, 0.0078125
        %v933 = vmul.f32 %v917, 0.0078125
        %v934 = vadd.f32 %v918, 1e-05
        %v935 = vadd.f32 %v919, 1e-05
        %v936 = vadd.f32 %v920, 1e-05
        %v937 = vadd.f32 %v921, 1e-05
        %v938 = vadd.f32 %v922, 1e-05
        %v939 = vadd.f32 %v923, 1e-05
        %v940 = vadd.f32 %v924, 1e-05
        %v941 = vadd.f32 %v925, 1e-05
        %v942 = vadd.f32 %v926, 1e-05
        %v943 = vadd.f32 %v927, 1e-05
        %v944 = vadd.f32 %v928, 1e-05
        %v945 = vadd.f32 %v929, 1e-05
        %v946 = vadd.f32 %v930, 1e-05
        %v947 = vadd.f32 %v931, 1e-05
        %v948 = vadd.f32 %v932, 1e-05
        %v949 = vadd.f32 %v933, 1e-05
        %v950 = vrsqrt.pop %v934
        %v951 = vrsqrt.pop %v935
        %v952 = vrsqrt.pop %v936
        %v953 = vrsqrt.pop %v937
        %v954 = vrsqrt.pop %v938
        %v955 = vrsqrt.pop %v939
        %v956 = vrsqrt.pop %v940
        %v957 = vrsqrt.pop %v941
        %v958 = vrsqrt.pop %v942
        %v959 = vrsqrt.pop %v943
        %v960 = vrsqrt.pop %v944
        %v961 = vrsqrt.pop %v945
        %v962 = vrsqrt.pop %v946
        %v963 = vrsqrt.pop %v947
        %v964 = vrsqrt.pop %v948
        %v965 = vrsqrt.pop %v949
        %v966 = vmul.f32 %v854, %v950
        %v967 = vmul.f32 %v855, %v951
        %v968 = vmul.f32 %v856, %v952
        %v969 = vmul.f32 %v857, %v953
        %v970 = vmul.f32 %v858, %v954
        %v971 = vmul.f32 %v859, %v955
        %v972 = vmul.f32 %v860, %v956
        %v973 = vmul.f32 %v861, %v957
        %v974 = vmul.f32 %v862, %v958
        %v975 = vmul.f32 %v863, %v959
        %v976 = vmul.f32 %v864, %v960
        %v977 = vmul.f32 %v865, %v961
        %v978 = vmul.f32 %v866, %v962
        %v979 = vmul.f32 %v867, %v963
        %v980 = vmul.f32 %v868, %v964
        %v981 = vmul.f32 %v869, %v965
        %v982 = vmul.f32 %v966, %v476
        %v983 = vmul.f32 %v967, %v476
        %v984 = vmul.f32 %v968, %v476
        %v985 = vmul.f32 %v969, %v476
        %v986 = vmul.f32 %v970, %v476
        %v987 = vmul.f32 %v971, %v476
        %v988 = vmul.f32 %v972, %v476
        %v989 = vmul.f32 %v973, %v476
        %v990 = vmul.f32 %v974, %v476
        %v991 = vmul.f32 %v975, %v476
        %v992 = vmul.f32 %v976, %v476
        %v993 = vmul.f32 %v977, %v476
        %v994 = vmul.f32 %v978, %v476
        %v995 = vmul.f32 %v979, %v476
        %v996 = vmul.f32 %v980, %v476
        %v997 = vmul.f32 %v981, %v476
        %v998 = vadd.f32 %v982, %v498
        %v999 = vadd.f32 %v983, %v498
        %v1000 = vadd.f32 %v984, %v498
        %v1001 = vadd.f32 %v985, %v498
        %v1002 = vadd.f32 %v986, %v498
        %v1003 = vadd.f32 %v987, %v498
        %v1004 = vadd.f32 %v988, %v498
        %v1005 = vadd.f32 %v989, %v498
        %v1006 = vadd.f32 %v990, %v498
        %v1007 = vadd.f32 %v991, %v498
        %v1008 = vadd.f32 %v992, %v498
        %v1009 = vadd.f32 %v993, %v498
        %v1010 = vadd.f32 %v994, %v498
        %v1011 = vadd.f32 %v995, %v498
        %v1012 = vadd.f32 %v996, %v498
        %v1013 = vadd.f32 %v997, %v498
        %1014 = vmatprep.subr.mxu0 0.0
        %1015 = vmatpush1.msra.mxu0 %v998
        %1016 = vmatprep.subr.mxu0 0.0
        %1017 = vmatpush1.msra.mxu0 %v999
        %1018 = vmatprep.subr.mxu0 0.0
        %1019 = vmatpush1.msra.mxu0 %v1000
        %1020 = vmatprep.subr.mxu0 0.0
        %1021 = vmatpush1.msra.mxu0 %v1001
        %1022 = vmatprep.subr.mxu0 0.0
        %1023 = vmatpush1.msra.mxu0 %v1002
        %1024 = vmatprep.subr.mxu0 0.0
        %1025 = vmatpush1.msra.mxu0 %v1003
        %1026 = vmatprep.subr.mxu0 0.0
        %1027 = vmatpush1.msra.mxu0 %v1004
        %1028 = vmatprep.subr.mxu0 0.0
        %1029 = vmatpush1.msra.mxu0 %v1005
        %1030 = vmatprep.subr.mxu0 0.0
        %1031 = vmatpush1.msra.mxu0 %v1006
        %1032 = vmatprep.subr.mxu0 0.0
        %1033 = vmatpush1.msra.mxu0 %v1007
        %1034 = vmatprep.subr.mxu0 0.0
        %1035 = vmatpush1.msra.mxu0 %v1008
        %1036 = vmatprep.subr.mxu0 0.0
        %1037 = vmatpush1.msra.mxu0 %v1009
        %1038 = vmatprep.subr.mxu0 0.0
        %1039 = vmatpush1.msra.mxu0 %v1010
        %1040 = vmatprep.subr.mxu0 0.0
        %1041 = vmatpush1.msra.mxu0 %v1011
        %1042 = vmatprep.subr.mxu0 0.0
        %1043 = vmatpush1.msra.mxu0 %v1012
        %1044 = vmatprep.subr.mxu0 0.0
        %1045 = vmatpush1.msra.mxu0 %v1013
        %1046 = vmatprep.subr.mxu0 0.0
        %1047 = vmatpush1.msra.mxu0 0.0
        %1048 = vmatprep.subr.mxu0 0.0
        %1049 = vmatpush1.msra.mxu0 0.0
        %1050 = vmatprep.subr.mxu0 0.0
        %1051 = vmatpush1.msra.mxu0 0.0
        %1052 = vmatprep.subr.mxu0 0.0
        %1053 = vmatpush1.msra.mxu0 0.0
        %1054 = vmatprep.subr.mxu0 0.0
        %1055 = vmatpush1.msra.mxu0 0.0
        %1056 = vmatprep.subr.mxu0 0.0
        %1057 = vmatpush1.msra.mxu0 0.0
        %1058 = vmatprep.subr.mxu0 0.0
        %1059 = vmatpush1.msra.mxu0 0.0
        %1060 = vmatprep.subr.mxu0 0.0
        %1061 = vmatpush1.msra.mxu0 0.0
        %1062 = vmatprep.subr.mxu0 0.0
        %1063 = vmatpush1.msra.mxu0 0.0
        %1064 = vmatprep.subr.mxu0 0.0
        %1065 = vmatpush1.msra.mxu0 0.0
        %1066 = vmatprep.subr.mxu0 0.0
        %1067 = vmatpush1.msra.mxu0 0.0
        %1068 = vmatprep.subr.mxu0 0.0
        %1069 = vmatpush1.msra.mxu0 0.0
        %1070 = vmatprep.subr.mxu0 0.0
        %1071 = vmatpush1.msra.mxu0 0.0
        %1072 = vmatprep.subr.mxu0 0.0
        %1073 = vmatpush1.msra.mxu0 0.0
        %1074 = vmatprep.subr.mxu0 0.0
        %1075 = vmatpush1.msra.mxu0 0.0
        %1076 = vmatprep.subr.mxu0 0.0
        %1077 = vmatpush1.msra.mxu0 0.0
        %1078 = vmatprep.mubr.f32.mxu0 0.0
        %1079 = vmatmul.mubr.f32.gmra.mrb[0].mxu0 %v246
        %v1080 = vpop.f32.mrb[0].mxu0
        %v1081 = vadd.f32 %v519, %v1080
        %v1082 = vpop.f32.mrb[0].mxu0
        %1083 = vmatprep.mubr.f32.mxu0 0.0
        %1084 = vmatmul.mubr.f32.gmra.mrb[0].mxu0 %v247
        %v1085 = vpop.f32.mrb[0].mxu0
        %v1086 = vadd.f32 %v524, %v1085
        %v1087 = vpop.f32.mrb[0].mxu0
        %1088 = vmatprep.mubr.f32.mxu0 0.0
        %1089 = vmatmul.mubr.f32.gmra.mrb[0].mxu0 %v248
        %v1090 = vpop.f32.mrb[0].mxu0
        %v1091 = vadd.f32 %v529, %v1090
        %v1092 = vpop.f32.mrb[0].mxu0
        %1093 = vmatprep.mubr.f32.mxu0 0.0
        %1094 = vmatmul.mubr.f32.gmra.mrb[0].mxu0 %v249
        %v1095 = vpop.f32.mrb[0].mxu0
        %v1096 = vadd.f32 %v534, %v1095
        %v1097 = vpop.f32.mrb[0].mxu0
        %1098 = vmatprep.mubr.f32.mxu0 0.0
        %1099 = vmatmul.mubr.f32.gmra.mrb[0].mxu0 %v250
        %v1100 = vpop.f32.mrb[0].mxu0
        %v1101 = vadd.f32 %v539, %v1100
        %v1102 = vpop.f32.mrb[0].mxu0
        %1103 = vmatprep.mubr.f32.mxu0 0.0
        %1104 = vmatmul.mubr.f32.gmra.mrb[0].mxu0 %v251
        %v1105 = vpop.f32.mrb[0].mxu0
        %v1106 = vadd.f32 %v544, %v1105
        %v1107 = vpop.f32.mrb[0].mxu0
        %1108 = vmatprep.mubr.f32.mxu0 0.0
        %1109 = vmatmul.mubr.f32.gmra.mrb[0].mxu0 %v252
        %v1110 = vpop.f32.mrb[0].mxu0
        %v1111 = vadd.f32 %v549, %v1110
        %v1112 = vpop.f32.mrb[0].mxu0
        %1113 = vmatprep.mubr.f32.mxu0 0.0
        %1114 = vmatmul.mubr.f32.gmra.mrb[0].mxu0 %v253
        %v1115 = vpop.f32.mrb[0].mxu0
        %v1116 = vadd.f32 %v554, %v1115
        %v1117 = vpop.f32.mrb[0].mxu0
        %1118 = vmatprep.mubr.f32.mxu0 0.0
        %1119 = vmatmul.mubr.f32.gmra.mrb[0].mxu0 %v254
        %v1120 = vpop.f32.mrb[0].mxu0
        %v1121 = vadd.f32 %v559, %v1120
        %v1122 = vpop.f32.mrb[0].mxu0
        %1123 = vmatprep.mubr.f32.mxu0 0.0
        %1124 = vmatmul.mubr.f32.gmra.mrb[0].mxu0 %v255
        %v1125 = vpop.f32.mrb[0].mxu0
        %v1126 = vadd.f32 %v564, %v1125
        %v1127 = vpop.f32.mrb[0].mxu0
        %1128 = vmatprep.mubr.f32.mxu0 0.0
        %1129 = vmatmul.mubr.f32.gmra.mrb[0].mxu0 %v256
        %v1130 = vpop.f32.mrb[0].mxu0
        %v1131 = vadd.f32 %v569, %v1130
        %v1132 = vpop.f32.mrb[0].mxu0
        %1133 = vmatprep.mubr.f32.mxu0 0.0
        %1134 = vmatmul.mubr.f32.gmra.mrb[0].mxu0 %v257
        %v1135 = vpop.f32.mrb[0].mxu0
        %v1136 = vadd.f32 %v574, %v1135
        %v1137 = vpop.f32.mrb[0].mxu0
        %1138 = vmatprep.mubr.f32.mxu0 0.0
        %1139 = vmatmul.mubr.f32.gmra.mrb[0].mxu0 %v258
        %v1140 = vpop.f32.mrb[0].mxu0
        %v1141 = vadd.f32 %v579, %v1140
        %v1142 = vpop.f32.mrb[0].mxu0
        %1143 = vmatprep.mubr.f32.mxu0 0.0
        %1144 = vmatmul.mubr.f32.gmra.mrb[0].mxu0 %v259
        %v1145 = vpop.f32.mrb[0].mxu0
        %v1146 = vadd.f32 %v584, %v1145
        %v1147 = vpop.f32.mrb[0].mxu0
        %1148 = vmatprep.mubr.f32.mxu0 0.0
        %1149 = vmatmul.mubr.f32.gmra.mrb[0].mxu0 %v260
        %v1150 = vpop.f32.mrb[0].mxu0
        %v1151 = vadd.f32 %v589, %v1150
        %v1152 = vpop.f32.mrb[0].mxu0
        %1153 = vmatprep.mubr.f32.mxu0 0.0
        %1154 = vmatmul.mubr.f32.gmra.mrb[0].mxu0 %v261
        %v1155 = vpop.f32.mrb[0].mxu0
        %v1156 = vadd.f32 %v594, %v1155
        %v1157 = vpop.f32.mrb[0].mxu0
        %1158 = vdwg.mxu0
        %v1159 = vld [vmem:[%s789] sm:$0xff]
        %v1160 = vld [vmem:[%s789 + $0x10] sm:$0xff]
        %v1161 = vld [vmem:[%s789 + $0x20] sm:$0xff]
        %v1162 = vld [vmem:[%s789 + $0x30] sm:$0xff]
        %v1163 = vld [vmem:[%s789 + $0x40] sm:$0xff]
        %v1164 = vld [vmem:[%s789 + $0x50] sm:$0xff]
        %v1165 = vld [vmem:[%s789 + $0x60] sm:$0xff]
        %v1166 = vld [vmem:[%s789 + $0x70] sm:$0xff]
        %v1167 = vld [vmem:[%s789 + $0x80] sm:$0xff]
        %v1168 = vld [vmem:[%s789 + $0x90] sm:$0xff]
        %v1169 = vld [vmem:[%s789 + $0xa0] sm:$0xff]
        %v1170 = vld [vmem:[%s789 + $0xb0] sm:$0xff]
        %v1171 = vld [vmem:[%s789 + $0xc0] sm:$0xff]
        %v1172 = vld [vmem:[%s789 + $0xd0] sm:$0xff]
        %v1173 = vld [vmem:[%s789 + $0xe0] sm:$0xff]
        %v1174 = vld [vmem:[%s789 + $0xf0] sm:$0xff]
        %v1175 = vmul.f32 %v1159, %v1081
        %v1176 = vmul.f32 %v1160, %v1086
        %v1177 = vmul.f32 %v1161, %v1091
        %v1178 = vmul.f32 %v1162, %v1096
        %v1179 = vmul.f32 %v1163, %v1101
        %v1180 = vmul.f32 %v1164, %v1106
        %v1181 = vmul.f32 %v1165, %v1111
        %v1182 = vmul.f32 %v1166, %v1116
        %v1183 = vmul.f32 %v1167, %v1121
        %v1184 = vmul.f32 %v1168, %v1126
        %v1185 = vmul.f32 %v1169, %v1131
        %v1186 = vmul.f32 %v1170, %v1136
        %v1187 = vmul.f32 %v1171, %v1141
        %v1188 = vmul.f32 %v1172, %v1146
        %v1189 = vmul.f32 %v1173, %v1151
        %v1190 = vmul.f32 %v1174, %v1156
        %s1191 = scalar_lea.vmem %s243, 128 [#allocation5]
        %1192 = vst [vmem:[%s1191] sm:$0xff] %v1175
        %1193 = vst [vmem:[%s1191 + $0x8] sm:$0xff] %v1176
        %1194 = vst [vmem:[%s1191 + $0x10] sm:$0xff] %v1177
        %1195 = vst [vmem:[%s1191 + $0x18] sm:$0xff] %v1178
        %1196 = vst [vmem:[%s1191 + $0x20] sm:$0xff] %v1179
        %1197 = vst [vmem:[%s1191 + $0x28] sm:$0xff] %v1180
        %1198 = vst [vmem:[%s1191 + $0x30] sm:$0xff] %v1181
        %1199 = vst [vmem:[%s1191 + $0x38] sm:$0xff] %v1182
        %1200 = vst [vmem:[%s1191 + $0x40] sm:$0xff] %v1183
        %1201 = vst [vmem:[%s1191 + $0x48] sm:$0xff] %v1184
        %1202 = vst [vmem:[%s1191 + $0x50] sm:$0xff] %v1185
        %1203 = vst [vmem:[%s1191 + $0x58] sm:$0xff] %v1186
        %1204 = vst [vmem:[%s1191 + $0x60] sm:$0xff] %v1187
        %1205 = vst [vmem:[%s1191 + $0x68] sm:$0xff] %v1188
        %1206 = vst [vmem:[%s1191 + $0x70] sm:$0xff] %v1189
        %1207 = vst [vmem:[%s1191 + $0x78] sm:$0xff] %v1190
        %s1208 = sand.u32 %s140, 1
        %s1209 = scalar_lea.sflag [#allocation4], %s1208
        %s1210 = sand.u32 %s140, 1
        %s1211 = smul.addr %s1210, 256
        %s1212 = scalar_lea.vmem [#allocation5], %s1211
        // Predicated region
        $region45: #{spatial_gating_unit.1} parent=39 // pred_check
          %p1213 = pneg %p150
        $region46: #{spatial_gating_unit.1} parent=39 // pred_check_branch
          %1215 = sbr.rel (%p1213) target = $region48
        $region47: #{spatial_gating_unit.1} parent=39 // pred_region
          %s1216 = smul.u32 2, %s22
          %s1218 = ssub.s32 4096, 4096
          %1219 = vsyncadd %s1209, %s1218
          %s1220 = smul.addr %s1216, 16
          %s1221 = smul.addr %s1220, 128
          %s1222 = scalar_lea.hbm %s5, %s1221
          %s1223 = sshll.u32 %s1212, 4
          %s1224 = int_to_ptr.vmem [resolvable:$true] %s1223
          %1229 = dma.vmem_to_hbm [thread:$0]  %s1224, 4096, %s1222, %s1209, 128, 128, 8
        $region48: #{spatial_gating_unit.1} parent=39 // pred_fallthru
          _
      $region40: #{spatial_gating_unit.1} parent=5 // pred_fallthru
        _
      %p1230 = scmp.le.s32.totalorder 2, %s17
      // Predicated region
      $region49: #{spatial_gating_unit.1} parent=5 // pred_check
        %p1231 = pneg %p1230
      $region50: #{spatial_gating_unit.1} parent=5 // pred_check_branch
        %1233 = sbr.rel (%p1231) target = $region52
      $region51: #{spatial_gating_unit.1} parent=5 // pred_region
        %s1234 = ssub.s32 %s17, 2
        // Predicated region
        $region53: #{spatial_gating_unit.1} parent=51 // pred_check
          %p1235 = pneg %p156
        $region54: #{spatial_gating_unit.1} parent=51 // pred_check_branch
          %1237 = sbr.rel (%p1235) target = $region56
        $region55: #{spatial_gating_unit.1} parent=51 // pred_region
          %s1238 = sand.u32 %s141, 1
          %s1239 = scalar_lea.sflag [#allocation4], %s1238
          %s1240 = sand.u32 %s141, 1
          %s1241 = smul.addr %s1240, 256
          %s1242 = scalar_lea.vmem [#allocation5], %s1241
          %1243 = dma.done %s1239, 4096
        $region56: #{spatial_gating_unit.1} parent=51 // pred_fallthru
          _
      $region52: #{spatial_gating_unit.1} parent=5 // pred_fallthru
        _
    $region6: #{spatial_gating_unit.1} parent=1 // loop_footer
      %s21 = sadd.s32 1, %s17
    $region7: #{spatial_gating_unit.1} parent=1 // loop_footer_branch
      %16 = sbr.rel target = $region3
    $region8: #{spatial_gating_unit.1} parent=1 // loop_exit
      _
    %1244 = vsyncpa [#allocation3], 1
    %s1245 = scalar_lea.sflag [#allocation3], 1
    %1246 = vsyncpa %s1245, 1
    %1247 = vsyncpa [#allocation4], 1
    %s1248 = scalar_lea.sflag [#allocation4], 1
    %1249 = vsyncpa %s1248, 1

</llo_original>
